<compile_context>
chip_gen: v7x
topology: tpu7x:2x2x1
jax: 0.10.0
libtpu: 0.0.40
codegen_flags: <defaults>
</compile_context>

<pallas_src>
import functools

import jax
import jax.numpy as jnp
import numpy as np
from jax import lax
from jax.experimental import pallas as pl
from jax.experimental.pallas import tpu as pltpu


def _round_up(x, m):
    return (x + m - 1) // m * m


def _encoder_kernel(NB, C8, P, E, Wp,
                    xe_ref, w0_ref, b0_ref, w1_ref, b1_ref, mask_ref,
                    x_out_ref, pool_out_ref,
                    ext_ref):
    """One batch block (NB images) per grid step.

    xe_ref   : (NB, C8, Pe)   zero-extended flattened padded images, channel-major
    w*_ref   : (C8, 9*C8)     im2col weights: W[co, t*C8+ci] = w[dy,dx,ci,co]
    b*_ref   : (C8, 1)
    mask_ref : (1, P)         1 at interior padded-grid positions, 0 at border
    outputs  : (NB, C8, P)    conv slab and "2x2-window max at every position" slab
    ext_ref  : (C8, Pe)       VMEM scratch: zero-extended activation slab
    """
    Pe = P + 2 * E
    # conv tap lane offsets: s_t = E + (dy-1)*Wp + (dx-1)
    taps = [E + (dy - 1) * Wp + (dx - 1) for dy in range(3) for dx in range(3)]

    # zero only the halo strips (interior [E, E+P) is always fully overwritten)
    halo = jnp.zeros((C8, E), jnp.float32)
    ext_ref[:, 0:E] = halo
    ext_ref[:, E + P:Pe] = halo

    mask = mask_ref[...]                       # (1, P)
    w0 = w0_ref[...]
    b0 = b0_ref[...]
    w1 = w1_ref[...]
    b1 = b1_ref[...]

    for n in range(NB):                        # NB is small and static
        xi = xe_ref[n]                         # (C8, Pe)

        # ---- conv0: single im2col matmul + bias + ReLU; mask zeroes the padded
        # grid border so it acts as the zero padding seen by conv1.
        patch0 = jnp.concatenate([xi[:, s:s + P] for s in taps], axis=0)   # (9*C8, P)
        y0 = jnp.dot(w0, patch0, preferred_element_type=jnp.float32) + b0
        y0 = jnp.maximum(y0, 0.0) * mask                                    # (C8, P)

        # ---- conv1: stage y0 into the zero-extended scratch, same im2col matmul
        ext_ref[:, E:E + P] = y0
        patch1 = jnp.concatenate([ext_ref[:, s:s + P] for s in taps], axis=0)
        y1 = jnp.dot(w1, patch1, preferred_element_type=jnp.float32) + b1
        y1 = jnp.maximum(y1, 0.0)                                           # (C8, P)

        # conv output slab (border stripped in the wrapper; lane-dense store)
        x_out_ref[n] = y1.astype(x_out_ref.dtype)

        # ---- 2x2 max pool: max over the 4 shifted slabs (VPU); the stride-2
        # extraction of the valid windows is a zero-FLOP slice in the wrapper.
        ext_ref[:, E:E + P] = y1
        m = jnp.maximum(
            jnp.maximum(ext_ref[:, E:E + P], ext_ref[:, E + 1:E + 1 + P]),
            jnp.maximum(ext_ref[:, E + Wp:E + Wp + P],
                        ext_ref[:, E + Wp + 1:E + Wp + 1 + P]))
        pool_out_ref[n] = m.astype(pool_out_ref.dtype)


def encoder_forward(x_nchw, w0, b0, w1, b1, *, block_n=None):
    """Encoder.forward.  x_nchw: (N, Cin, H, W).  Conv weights in HWIO layout."""
    N, Cin, H, W = x_nchw.shape
    Cout = w0.shape[-1]
    assert H % 2 == 0 and W % 2 == 0, "ceil_mode pool path only handled for even H, W"

    Hp, Wp = H + 2, W + 2
    P = Hp * Wp
    E = _round_up(Wp + 1, 8)           # halo width (>= Wp+1), 8-aligned
    Pe = P + 2 * E
    C8 = _round_up(max(Cin, Cout), 8)  # padded channel count (sublane tile)

    if block_n is None:
        # batch several images per step, but keep >=2 grid blocks when possible
        block_n = max(1, min(4, pl.cdiv(N, 2)))
    n_blocks = pl.cdiv(N, block_n)
    Npad = n_blocks * block_n

    # ---- glue: pack NCHW input into channel-major zero-extended slabs -------
    xpad = jnp.pad(x_nchw.astype(jnp.float32),
                   ((0, Npad - N), (0, C8 - Cin), (1, 1), (1, 1)))   # (Npad,C8,Hp,Wp)
    xe = jnp.pad(xpad.reshape(Npad, C8, P), ((0, 0), (0, 0), (E, E)))  # (Npad,C8,Pe)

    # im2col weights: Wk[co, (dy*3+dx)*C8 + ci] = w[dy, dx, ci, co]
    w0p = jnp.pad(w0.astype(jnp.float32),
                  ((0, 0), (0, 0), (0, C8 - Cin), (0, C8 - Cout)))
    w1p = jnp.pad(w1.astype(jnp.float32),
                  ((0, 0), (0, 0), (0, C8 - Cout), (0, C8 - Cout)))
    W0 = jnp.transpose(w0p, (3, 0, 1, 2)).reshape(C8, 9 * C8)
    W1 = jnp.transpose(w1p, (3, 0, 1, 2)).reshape(C8, 9 * C8)
    B0 = jnp.pad(b0.astype(jnp.float32), (0, C8 - Cout)).reshape(C8, 1)
    B1 = jnp.pad(b1.astype(jnp.float32), (0, C8 - Cout)).reshape(C8, 1)

    # interior mask over the flattened padded grid
    q = jnp.arange(P, dtype=jnp.int32)
    r, c = q // Wp, q % Wp
    mask = (((r >= 1) & (r <= H) & (c >= 1) & (c <= W))
            .astype(jnp.float32))[None, :]                            # (1, P)

    kernel = functools.partial(_encoder_kernel, block_n, C8, P, E, Wp)

    grid_spec = pltpu.PrefetchScalarGridSpec(
        num_scalar_prefetch=0,
        grid=(n_blocks,),
        in_specs=[
            pl.BlockSpec((block_n, C8, Pe), lambda b: (b, 0, 0)),
            pl.BlockSpec((C8, 9 * C8), lambda b: (0, 0)),
            pl.BlockSpec((C8, 1), lambda b: (0, 0)),
            pl.BlockSpec((C8, 9 * C8), lambda b: (0, 0)),
            pl.BlockSpec((C8, 1), lambda b: (0, 0)),
            pl.BlockSpec((1, P), lambda b: (0, 0)),
        ],
        out_specs=[
            pl.BlockSpec((block_n, C8, P), lambda b: (b, 0, 0)),
            pl.BlockSpec((block_n, C8, P), lambda b: (b, 0, 0)),
        ],
        scratch_shapes=[pltpu.VMEM((C8, Pe), jnp.float32)],
    )

    x_slab, pool_slab = pl.pallas_call(
        kernel,
        grid_spec=grid_spec,
        out_shape=(jax.ShapeDtypeStruct((Npad, C8, P), jnp.float32),
                   jax.ShapeDtypeStruct((Npad, C8, P), jnp.float32)),
        compiler_params=pltpu.CompilerParams(
            dimension_semantics=("parallel",)),
    )(xe, W0, B0, W1, B1, mask)

    # ---- glue: zero-FLOP layout strips; slabs are already NCHW-major ---------
    x_out = (x_slab[:N, :Cout].reshape(N, Cout, Hp, Wp)
             [:, :, 1:H + 1, 1:W + 1])
    pool_out = (pool_slab[:N, :Cout].reshape(N, Cout, Hp, Wp)
                [:, :, 1:H + 1:2, 1:W + 1:2])
    return x_out, pool_out


def ref_forward(x_nchw, w0, b0, w1, b1):
    """Pure-JAX reference of Encoder.forward (relu, no BN, even H/W)."""
    x = jnp.transpose(x_nchw, (0, 2, 3, 1)).astype(jnp.float32)
    dn = ('NHWC', 'HWIO', 'NHWC')
    y = lax.conv_general_dilated(x, w0, (1, 1), ((1, 1), (1, 1)),
                                 dimension_numbers=dn)
    y = jnp.maximum(y + b0, 0.0)
    y = lax.conv_general_dilated(y, w1, (1, 1), ((1, 1), (1, 1)),
                                 dimension_numbers=dn)
    y = jnp.maximum(y + b1, 0.0)
    pooled = lax.reduce_window(y, -jnp.inf, lax.max,
                               (1, 2, 2, 1), (1, 2, 2, 1), 'VALID')
    return (jnp.transpose(y, (0, 3, 1, 2)),
            jnp.transpose(pooled, (0, 3, 1, 2)))


if __name__ == "__main__":
    N, Cin, Cout, H, W = 2, 4, 8, 16, 16

    key = jax.random.PRNGKey(0)
    kx, k0, k1, kb0, kb1 = jax.random.split(key, 5)
    x = jax.random.normal(kx, (N, Cin, H, W), jnp.float32)

    # deterministic parameter init (uniform, scaled by 1/sqrt(fan_in))
    fan0, fan1 = Cin * 9, Cout * 9
    w0 = jax.random.uniform(k0, (3, 3, Cin, Cout), jnp.float32, -1, 1) / np.sqrt(fan0)
    w1 = jax.random.uniform(k1, (3, 3, Cout, Cout), jnp.float32, -1, 1) / np.sqrt(fan1)
    b0 = jax.random.uniform(kb0, (Cout,), jnp.float32, -1, 1) / np.sqrt(fan0)
    b1 = jax.random.uniform(kb1, (Cout,), jnp.float32, -1, 1) / np.sqrt(fan1)

    x_out, pool_out = jax.jit(encoder_forward)(x, w0, b0, w1, b1)
    jax.block_until_ready((x_out, pool_out))

    x_ref, pool_ref = ref_forward(x, w0, b0, w1, b1)
    np.testing.assert_allclose(np.asarray(x_out), np.asarray(x_ref),
                               atol=1e-4, rtol=1e-4)
    np.testing.assert_allclose(np.asarray(pool_out), np.asarray(pool_ref),
                               atol=1e-4, rtol=1e-4)

    print("KERNEL_OK")
</pallas_src>

<mosaic_0001>
module attributes {stable_mosaic.version = 11 : i64} {
  func.func @_encoder_kernel(%arg0: i32, %arg1: memref<1x8x372xf32, #tpu.memory_space<vmem>>, %arg2: memref<8x72xf32, #tpu.memory_space<vmem>>, %arg3: memref<8x1xf32, #tpu.memory_space<vmem>>, %arg4: memref<8x72xf32, #tpu.memory_space<vmem>>, %arg5: memref<8x1xf32, #tpu.memory_space<vmem>>, %arg6: memref<1x324xf32, #tpu.memory_space<vmem>>, %arg7: memref<1x8x324xf32, #tpu.memory_space<vmem>>, %arg8: memref<1x8x324xf32, #tpu.memory_space<vmem>>, %arg9: memref<8x372xf32, #tpu.memory_space<vmem>>) attributes {dimension_semantics = [#tpu.dimension_semantics<parallel>], iteration_bounds = array<i64: 2>, scalar_prefetch = 0 : i64, scratch_operands = 1 : i64, tpu.core_type = #tpu.core_type<tc>, window_params = [{transform_indices = @transform_0, window_bounds = array<i64: 1, 8, 372>}, {pipeline_mode = #tpu.pipeline_mode<synchronous>, transform_indices = @transform_1, window_bounds = array<i64: 8, 72>}, {pipeline_mode = #tpu.pipeline_mode<synchronous>, transform_indices = @transform_2, window_bounds = array<i64: 8, 1>}, {pipeline_mode = #tpu.pipeline_mode<synchronous>, transform_indices = @transform_3, window_bounds = array<i64: 8, 72>}, {pipeline_mode = #tpu.pipeline_mode<synchronous>, transform_indices = @transform_4, window_bounds = array<i64: 8, 1>}, {pipeline_mode = #tpu.pipeline_mode<synchronous>, transform_indices = @transform_5, window_bounds = array<i64: 1, 324>}, {transform_indices = @transform_6, window_bounds = array<i64: 1, 8, 324>}, {transform_indices = @transform_7, window_bounds = array<i64: 1, 8, 324>}]} {
    %cst = arith.constant 0.000000e+00 : f32
    %0 = vector.broadcast %cst : f32 to vector<8x24xf32>
    %c0 = arith.constant 0 : index
    %c0_0 = arith.constant 0 : index
    %1 = vector.load %arg9[%c0, %c0_0] : memref<8x372xf32, #tpu.memory_space<vmem>>, vector<8x24xf32>
    tpu.vector_store %arg9[%c0, %c0_0], %0 {strides = array<i32>} : memref<8x372xf32, #tpu.memory_space<vmem>>, vector<8x24xf32>,
    %c0_1 = arith.constant 0 : index
    %c348 = arith.constant 348 : index
    %2 = vector.load %arg9[%c0_1, %c348] : memref<8x372xf32, #tpu.memory_space<vmem>>, vector<8x24xf32>
    tpu.vector_store %arg9[%c0_1, %c348], %0 {strides = array<i32>} : memref<8x372xf32, #tpu.memory_space<vmem>>, vector<8x24xf32>,
    %c0_2 = arith.constant 0 : index
    %c0_3 = arith.constant 0 : index
    %3 = vector.load %arg6[%c0_2, %c0_3] : memref<1x324xf32, #tpu.memory_space<vmem>>, vector<1x324xf32>
    %c0_4 = arith.constant 0 : index
    %c0_5 = arith.constant 0 : index
    %4 = vector.load %arg2[%c0_4, %c0_5] : memref<8x72xf32, #tpu.memory_space<vmem>>, vector<8x72xf32>
    %c0_6 = arith.constant 0 : index
    %c0_7 = arith.constant 0 : index
    %5 = vector.load %arg3[%c0_6, %c0_7] : memref<8x1xf32, #tpu.memory_space<vmem>>, vector<8x1xf32>
    %c0_8 = arith.constant 0 : index
    %c0_9 = arith.constant 0 : index
    %6 = vector.load %arg4[%c0_8, %c0_9] : memref<8x72xf32, #tpu.memory_space<vmem>>, vector<8x72xf32>
    %c0_10 = arith.constant 0 : index
    %c0_11 = arith.constant 0 : index
    %7 = vector.load %arg5[%c0_10, %c0_11] : memref<8x1xf32, #tpu.memory_space<vmem>>, vector<8x1xf32>
    %c0_12 = arith.constant 0 : index
    %c0_13 = arith.constant 0 : index
    %c0_14 = arith.constant 0 : index
    %8 = vector.load %arg1[%c0_12, %c0_13, %c0_14] : memref<1x8x372xf32, #tpu.memory_space<vmem>>, vector<1x8x372xf32>
    %9 = vector.shape_cast %8 : vector<1x8x372xf32> to vector<8x372xf32>
    %10 = vector.extract_strided_slice %9 {offsets = [0, 5], sizes = [8, 324], strides = [1, 1]} : vector<8x372xf32> to vector<8x324xf32>
    %11 = vector.extract_strided_slice %9 {offsets = [0, 6], sizes = [8, 324], strides = [1, 1]} : vector<8x372xf32> to vector<8x324xf32>
    %12 = vector.extract_strided_slice %9 {offsets = [0, 7], sizes = [8, 324], strides = [1, 1]} : vector<8x372xf32> to vector<8x324xf32>
    %13 = vector.extract_strided_slice %9 {offsets = [0, 23], sizes = [8, 324], strides = [1, 1]} : vector<8x372xf32> to vector<8x324xf32>
    %14 = vector.extract_strided_slice %9 {offsets = [0, 24], sizes = [8, 324], strides = [1, 1]} : vector<8x372xf32> to vector<8x324xf32>
    %15 = vector.extract_strided_slice %9 {offsets = [0, 25], sizes = [8, 324], strides = [1, 1]} : vector<8x372xf32> to vector<8x324xf32>
    %16 = vector.extract_strided_slice %9 {offsets = [0, 41], sizes = [8, 324], strides = [1, 1]} : vector<8x372xf32> to vector<8x324xf32>
    %17 = vector.extract_strided_slice %9 {offsets = [0, 42], sizes = [8, 324], strides = [1, 1]} : vector<8x372xf32> to vector<8x324xf32>
    %18 = vector.extract_strided_slice %9 {offsets = [0, 43], sizes = [8, 324], strides = [1, 1]} : vector<8x372xf32> to vector<8x324xf32>
    %19 = tpu.concatenate %10, %11, %12, %13, %14, %15, %16, %17, %18 in 0 : vector<8x324xf32>, vector<8x324xf32>, vector<8x324xf32>, vector<8x324xf32>, vector<8x324xf32>, vector<8x324xf32>, vector<8x324xf32>, vector<8x324xf32>, vector<8x324xf32> -> vector<72x324xf32>
    %cst_15 = arith.constant dense<0.000000e+00> : vector<8x324xf32>
    %20 = tpu.matmul %4, %19, %cst_15 {dimension_numbers = #tpu.dot_dimension_numbers<[1], [0], [0], [1], [0, 0, 1, 1], [], []>} : vector<8x72xf32>, vector<72x324xf32>, vector<8x324xf32> -> vector<8x324xf32>
    %21 = vector.broadcast %5 : vector<8x1xf32> to vector<8x324xf32>
    %22 = arith.addf %20, %21 : vector<8x324xf32>
    %cst_16 = arith.constant 0.000000e+00 : f32
    %23 = vector.broadcast %cst_16 : f32 to vector<8x324xf32>
    %24 = arith.maximumf %22, %23 : vector<8x324xf32>
    %25 = vector.broadcast %3 : vector<1x324xf32> to vector<8x324xf32>
    %26 = arith.mulf %24, %25 : vector<8x324xf32>
    %c0_17 = arith.constant 0 : index
    %c24 = arith.constant 24 : index
    %27 = vector.load %arg9[%c0_17, %c24] : memref<8x372xf32, #tpu.memory_space<vmem>>, vector<8x324xf32>
    tpu.vector_store %arg9[%c0_17, %c24], %26 {strides = array<i32>} : memref<8x372xf32, #tpu.memory_space<vmem>>, vector<8x324xf32>,
    %c0_18 = arith.constant 0 : index
    %c5 = arith.constant 5 : index
    %28 = vector.load %arg9[%c0_18, %c5] : memref<8x372xf32, #tpu.memory_space<vmem>>, vector<8x324xf32>
    %c0_19 = arith.constant 0 : index
    %c6 = arith.constant 6 : index
    %29 = vector.load %arg9[%c0_19, %c6] : memref<8x372xf32, #tpu.memory_space<vmem>>, vector<8x324xf32>
    %c0_20 = arith.constant 0 : index
    %c7 = arith.constant 7 : index
    %30 = vector.load %arg9[%c0_20, %c7] : memref<8x372xf32, #tpu.memory_space<vmem>>, vector<8x324xf32>
    %c0_21 = arith.constant 0 : index
    %c23 = arith.constant 23 : index
    %31 = vector.load %arg9[%c0_21, %c23] : memref<8x372xf32, #tpu.memory_space<vmem>>, vector<8x324xf32>
    %c0_22 = arith.constant 0 : index
    %c24_23 = arith.constant 24 : index
    %32 = vector.load %arg9[%c0_22, %c24_23] : memref<8x372xf32, #tpu.memory_space<vmem>>, vector<8x324xf32>
    %c0_24 = arith.constant 0 : index
    %c25 = arith.constant 25 : index
    %33 = vector.load %arg9[%c0_24, %c25] : memref<8x372xf32, #tpu.memory_space<vmem>>, vector<8x324xf32>
    %c0_25 = arith.constant 0 : index
    %c41 = arith.constant 41 : index
    %34 = vector.load %arg9[%c0_25, %c41] : memref<8x372xf32, #tpu.memory_space<vmem>>, vector<8x324xf32>
    %c0_26 = arith.constant 0 : index
    %c42 = arith.constant 42 : index
    %35 = vector.load %arg9[%c0_26, %c42] : memref<8x372xf32, #tpu.memory_space<vmem>>, vector<8x324xf32>
    %c0_27 = arith.constant 0 : index
    %c43 = arith.constant 43 : index
    %36 = vector.load %arg9[%c0_27, %c43] : memref<8x372xf32, #tpu.memory_space<vmem>>, vector<8x324xf32>
    %37 = tpu.concatenate %28, %29, %30, %31, %32, %33, %34, %35, %36 in 0 : vector<8x324xf32>, vector<8x324xf32>, vector<8x324xf32>, vector<8x324xf32>, vector<8x324xf32>, vector<8x324xf32>, vector<8x324xf32>, vector<8x324xf32>, vector<8x324xf32> -> vector<72x324xf32>
    %cst_28 = arith.constant dense<0.000000e+00> : vector<8x324xf32>
    %38 = tpu.matmul %6, %37, %cst_28 {dimension_numbers = #tpu.dot_dimension_numbers<[1], [0], [0], [1], [0, 0, 1, 1], [], []>} : vector<8x72xf32>, vector<72x324xf32>, vector<8x324xf32> -> vector<8x324xf32>
    %39 = vector.broadcast %7 : vector<8x1xf32> to vector<8x324xf32>
    %40 = arith.addf %38, %39 : vector<8x324xf32>
    %cst_29 = arith.constant 0.000000e+00 : f32
    %41 = vector.broadcast %cst_29 : f32 to vector<8x324xf32>
    %42 = arith.maximumf %40, %41 : vector<8x324xf32>
    %c0_30 = arith.constant 0 : index
    %c0_31 = arith.constant 0 : index
    %c0_32 = arith.constant 0 : index
    %43 = vector.load %arg7[%c0_30, %c0_31, %c0_32] : memref<1x8x324xf32, #tpu.memory_space<vmem>>, vector<1x8x324xf32>
    %44 = vector.shape_cast %43 : vector<1x8x324xf32> to vector<8x324xf32>
    %45 = vector.shape_cast %42 : vector<8x324xf32> to vector<1x8x324xf32>
    tpu.vector_store %arg7[%c0_30, %c0_31, %c0_32], %45 {strides = array<i32>} : memref<1x8x324xf32, #tpu.memory_space<vmem>>, vector<1x8x324xf32>,
    %c0_33 = arith.constant 0 : index
    %c24_34 = arith.constant 24 : index
    %46 = vector.load %arg9[%c0_33, %c24_34] : memref<8x372xf32, #tpu.memory_space<vmem>>, vector<8x324xf32>
    tpu.vector_store %arg9[%c0_33, %c24_34], %42 {strides = array<i32>} : memref<8x372xf32, #tpu.memory_space<vmem>>, vector<8x324xf32>,
    %c0_35 = arith.constant 0 : index
    %c24_36 = arith.constant 24 : index
    %47 = vector.load %arg9[%c0_35, %c24_36] : memref<8x372xf32, #tpu.memory_space<vmem>>, vector<8x324xf32>
    %c0_37 = arith.constant 0 : index
    %c25_38 = arith.constant 25 : index
    %48 = vector.load %arg9[%c0_37, %c25_38] : memref<8x372xf32, #tpu.memory_space<vmem>>, vector<8x324xf32>
    %49 = arith.maximumf %47, %48 : vector<8x324xf32>
    %c0_39 = arith.constant 0 : index
    %c42_40 = arith.constant 42 : index
    %50 = vector.load %arg9[%c0_39, %c42_40] : memref<8x372xf32, #tpu.memory_space<vmem>>, vector<8x324xf32>
    %c0_41 = arith.constant 0 : index
    %c43_42 = arith.constant 43 : index
    %51 = vector.load %arg9[%c0_41, %c43_42] : memref<8x372xf32, #tpu.memory_space<vmem>>, vector<8x324xf32>
    %52 = arith.maximumf %50, %51 : vector<8x324xf32>
    %53 = arith.maximumf %49, %52 : vector<8x324xf32>
    %c0_43 = arith.constant 0 : index
    %c0_44 = arith.constant 0 : index
    %c0_45 = arith.constant 0 : index
    %54 = vector.load %arg8[%c0_43, %c0_44, %c0_45] : memref<1x8x324xf32, #tpu.memory_space<vmem>>, vector<1x8x324xf32>
    %55 = vector.shape_cast %54 : vector<1x8x324xf32> to vector<8x324xf32>
    %56 = vector.shape_cast %53 : vector<8x324xf32> to vector<1x8x324xf32>
    tpu.vector_store %arg8[%c0_43, %c0_44, %c0_45], %56 {strides = array<i32>} : memref<1x8x324xf32, #tpu.memory_space<vmem>>, vector<1x8x324xf32>,
    return
  }
  func.func @transform_0(%arg0: i32) -> (i32, i32, i32) {
    %c0_i32 = arith.constant 0 : i32
    %c0_i32_0 = arith.constant 0 : i32
    %c0_i32_1 = arith.constant 0 : i32
    return %arg0, %c0_i32, %c0_i32_0 : i32, i32, i32
  }
  func.func @transform_1(%arg0: i32) -> (i32, i32) {
    %c0_i32 = arith.constant 0 : i32
    %c0_i32_0 = arith.constant 0 : i32
    %c0_i32_1 = arith.constant 0 : i32
    return %c0_i32, %c0_i32_0 : i32, i32
  }
  func.func @transform_2(%arg0: i32) -> (i32, i32) {
    %c0_i32 = arith.constant 0 : i32
    %c0_i32_0 = arith.constant 0 : i32
    %c0_i32_1 = arith.constant 0 : i32
    return %c0_i32, %c0_i32_0 : i32, i32
  }
  func.func @transform_3(%arg0: i32) -> (i32, i32) {
    %c0_i32 = arith.constant 0 : i32
    %c0_i32_0 = arith.constant 0 : i32
    %c0_i32_1 = arith.constant 0 : i32
    return %c0_i32, %c0_i32_0 : i32, i32
  }
  func.func @transform_4(%arg0: i32) -> (i32, i32) {
    %c0_i32 = arith.constant 0 : i32
    %c0_i32_0 = arith.constant 0 : i32
    %c0_i32_1 = arith.constant 0 : i32
    return %c0_i32, %c0_i32_0 : i32, i32
  }
  func.func @transform_5(%arg0: i32) -> (i32, i32) {
    %c0_i32 = arith.constant 0 : i32
    %c0_i32_0 = arith.constant 0 : i32
    %c0_i32_1 = arith.constant 0 : i32
    return %c0_i32, %c0_i32_0 : i32, i32
  }
  func.func @transform_6(%arg0: i32) -> (i32, i32, i32) {
    %c0_i32 = arith.constant 0 : i32
    %c0_i32_0 = arith.constant 0 : i32
    %c0_i32_1 = arith.constant 0 : i32
    return %arg0, %c0_i32, %c0_i32_0 : i32, i32, i32
  }
  func.func @transform_7(%arg0: i32) -> (i32, i32, i32) {
    %c0_i32 = arith.constant 0 : i32
    %c0_i32_0 = arith.constant 0 : i32
    %c0_i32_1 = arith.constant 0 : i32
    return %arg0, %c0_i32, %c0_i32_0 : i32, i32, i32
  }
}

</mosaic_0001>

<llo_original>
// kernel: encoder_forward.1
$region0: #{encoder_forward.1}
  #allocation0 [shape = 'u32[]', space=smem, size = 0x4, offset = 0x4, fixed_abs, tag = 'smem constant byte address 0x4 - core index']
  #allocation1 [shape = 'u32[144,128]{1,0:T(1,128)}', space=vmem, size = 0x12000, scoped, tag = 'internal scratch']
  #allocation2 [shape = 'f32[8,372]{1,0:T(8,128)}', space=vmem, size = 0x3000, scoped, tag = 'scratch operand']
  %s0 = inlined_call_operand.vmem [shape: f32[2,8,372], index: 0, kind: input, shape index: {}]
  %s1 = inlined_call_operand.vmem [shape: f32[8,72], index: 1, kind: input, shape index: {}]
  %s2 = inlined_call_operand.vmem [shape: f32[8,1], index: 2, kind: input, shape index: {}]
  %s3 = inlined_call_operand.vmem [shape: f32[8,72], index: 3, kind: input, shape index: {}]
  %s4 = inlined_call_operand.vmem [shape: f32[8,1], index: 4, kind: input, shape index: {}]
  %s5 = inlined_call_operand.vmem [shape: f32[1,324], index: 5, kind: input, shape index: {}]
  %s6 = inlined_call_operand.vmem [shape: f32[2,8,324], index: 6, kind: output, shape index: {0}]
  %s7 = inlined_call_operand.vmem [shape: f32[2,8,324], index: 7, kind: output, shape index: {1}]
  %8 = xla_tuple %s6, %s7
  %s9 = sld [smem:[#allocation0]]
  $region65: #{encoder_forward.1} parent=0
    _
  %s11 = ssub.s32 1, %s9
  %s12 = scalar_select 0, %s11, %s9
  loop: start=0, step=1, limit=4
  $region2: #{encoder_forward.1} parent=0 // loop_pre_header
    _
  $region3: #{encoder_forward.1} parent=0 // loop_header
    %s14 = sphi 0, %s18
    %p15 = scmp.ge.s32.totalorder %s14, 4
    %s24 = sphi 0, %s26
    %s27 = sphi 0, %s24
    %s28 = sphi 0, %s27
    %s44 = sphi 0, %s28
    %s48 = sphi 0, %s48
    %s50 = sphi 0, %s48
    %s51 = sphi 0, %s50
    %s65 = sphi 0, %s51
    %s69 = sphi 0, %s69
    %s71 = sphi 0, %s69
    %s72 = sphi 0, %s71
    %s86 = sphi 0, %s72
    %s90 = sphi 0, %s90
    %s92 = sphi 0, %s90
    %s93 = sphi 0, %s92
    %s107 = sphi 0, %s93
    %s111 = sphi 0, %s111
    %s113 = sphi 0, %s111
    %s114 = sphi 0, %s113
    %s128 = sphi 0, %s114
    %s132 = sphi 0, %s132
    %s134 = sphi 0, %s132
    %s135 = sphi 0, %s134
    %s149 = sphi 0, %s135
    %s155 = sphi 0, %s157
    %s158 = sphi 0, %s155
    %s159 = sphi 0, %s158
    %s175 = sphi 0, %s159
    %s181 = sphi 0, %s183
    %s184 = sphi 0, %s181
    %s185 = sphi 0, %s184
    %s201 = sphi 0, %s185
  $region4: #{encoder_forward.1} parent=0 // loop_header_branch
    %17 = sbr.rel (%p15) target = $region8
  $region5: #{encoder_forward.1} parent=0 // loop_body
    %s19 = ssub.s32 %s14, 1
    %s20 = ssub.s32 %s14, 2
    %s21 = sadd.s32 %s14, 1
    %s22 = ssub.s32 %s14, %s21
    %p23 = scmp.eq.s32.totalorder %s22, 0
    %s25 = sadd.s32 %s24, 1
    %s26 = scalar_select %p23, %s24, %s25
    %p29 = pneg %p23
    %p30 = scmp.eq.s32.totalorder %s14, 1
    %p31 = por %p29, %p30
    %p32 = scmp.ne.s32.totalorder %s24, %s27
    %p33 = scmp.eq.s32.totalorder %s14, 0
    %p34 = por %p32, %p33
    %p35 = scmp.ne.s32.totalorder %s24, %s27
    %p36 = scmp.eq.s32.totalorder %s19, 1
    %p37 = por %p35, %p36
    %p38 = scmp.ne.s32.totalorder %s27, %s28
    %p39 = scmp.eq.s32.totalorder %s19, 0
    %p40 = por %p38, %p39
    %p41 = scmp.ne.s32.totalorder %s27, %s28
    %p42 = scmp.eq.s32.totalorder %s20, 1
    %p43 = por %p41, %p42
    %p45 = scmp.ne.s32.totalorder %s28, %s44
    %p46 = scmp.eq.s32.totalorder %s20, 0
    %p47 = por %p45, %p46
    %s49 = sadd.s32 %s48, 1
    %p52 = scmp.eq.s32.totalorder %s14, 1
    %p53 = scmp.ne.s32.totalorder %s48, %s50
    %p54 = scmp.eq.s32.totalorder %s14, 0
    %p55 = por %p53, %p54
    %p56 = scmp.ne.s32.totalorder %s48, %s50
    %p57 = scmp.eq.s32.totalorder %s19, 1
    %p58 = por %p56, %p57
    %p59 = scmp.ne.s32.totalorder %s50, %s51
    %p60 = scmp.eq.s32.totalorder %s19, 0
    %p61 = por %p59, %p60
    %p62 = scmp.ne.s32.totalorder %s50, %s51
    %p63 = scmp.eq.s32.totalorder %s20, 1
    %p64 = por %p62, %p63
    %p66 = scmp.ne.s32.totalorder %s51, %s65
    %p67 = scmp.eq.s32.totalorder %s20, 0
    %p68 = por %p66, %p67
    %s70 = sadd.s32 %s69, 1
    %p73 = scmp.eq.s32.totalorder %s14, 1
    %p74 = scmp.ne.s32.totalorder %s69, %s71
    %p75 = scmp.eq.s32.totalorder %s14, 0
    %p76 = por %p74, %p75
    %p77 = scmp.ne.s32.totalorder %s69, %s71
    %p78 = scmp.eq.s32.totalorder %s19, 1
    %p79 = por %p77, %p78
    %p80 = scmp.ne.s32.totalorder %s71, %s72
    %p81 = scmp.eq.s32.totalorder %s19, 0
    %p82 = por %p80, %p81
    %p83 = scmp.ne.s32.totalorder %s71, %s72
    %p84 = scmp.eq.s32.totalorder %s20, 1
    %p85 = por %p83, %p84
    %p87 = scmp.ne.s32.totalorder %s72, %s86
    %p88 = scmp.eq.s32.totalorder %s20, 0
    %p89 = por %p87, %p88
    %s91 = sadd.s32 %s90, 1
    %p94 = scmp.eq.s32.totalorder %s14, 1
    %p95 = scmp.ne.s32.totalorder %s90, %s92
    %p96 = scmp.eq.s32.totalorder %s14, 0
    %p97 = por %p95, %p96
    %p98 = scmp.ne.s32.totalorder %s90, %s92
    %p99 = scmp.eq.s32.totalorder %s19, 1
    %p100 = por %p98, %p99
    %p101 = scmp.ne.s32.totalorder %s92, %s93
    %p102 = scmp.eq.s32.totalorder %s19, 0
    %p103 = por %p101, %p102
    %p104 = scmp.ne.s32.totalorder %s92, %s93
    %p105 = scmp.eq.s32.totalorder %s20, 1
    %p106 = por %p104, %p105
    %p108 = scmp.ne.s32.totalorder %s93, %s107
    %p109 = scmp.eq.s32.totalorder %s20, 0
    %p110 = por %p108, %p109
    %s112 = sadd.s32 %s111, 1
    %p115 = scmp.eq.s32.totalorder %s14, 1
    %p116 = scmp.ne.s32.totalorder %s111, %s113
    %p117 = scmp.eq.s32.totalorder %s14, 0
    %p118 = por %p116, %p117
    %p119 = scmp.ne.s32.totalorder %s111, %s113
    %p120 = scmp.eq.s32.totalorder %s19, 1
    %p121 = por %p119, %p120
    %p122 = scmp.ne.s32.totalorder %s113, %s114
    %p123 = scmp.eq.s32.totalorder %s19, 0
    %p124 = por %p122, %p123
    %p125 = scmp.ne.s32.totalorder %s113, %s114
    %p126 = scmp.eq.s32.totalorder %s20, 1
    %p127 = por %p125, %p126
    %p129 = scmp.ne.s32.totalorder %s114, %s128
    %p130 = scmp.eq.s32.totalorder %s20, 0
    %p131 = por %p129, %p130
    %s133 = sadd.s32 %s132, 1
    %p136 = scmp.eq.s32.totalorder %s14, 1
    %p137 = scmp.ne.s32.totalorder %s132, %s134
    %p138 = scmp.eq.s32.totalorder %s14, 0
    %p139 = por %p137, %p138
    %p140 = scmp.ne.s32.totalorder %s132, %s134
    %p141 = scmp.eq.s32.totalorder %s19, 1
    %p142 = por %p140, %p141
    %p143 = scmp.ne.s32.totalorder %s134, %s135
    %p144 = scmp.eq.s32.totalorder %s19, 0
    %p145 = por %p143, %p144
    %p146 = scmp.ne.s32.totalorder %s134, %s135
    %p147 = scmp.eq.s32.totalorder %s20, 1
    %p148 = por %p146, %p147
    %p150 = scmp.ne.s32.totalorder %s135, %s149
    %p151 = scmp.eq.s32.totalorder %s20, 0
    %p152 = por %p150, %p151
    %s153 = ssub.s32 %s14, %s21
    %p154 = scmp.eq.s32.totalorder %s153, 0
    %s156 = sadd.s32 %s155, 1
    %s157 = scalar_select %p154, %s155, %s156
    %p160 = pneg %p154
    %p161 = scmp.eq.s32.totalorder %s14, 1
    %p162 = por %p160, %p161
    %p163 = scmp.ne.s32.totalorder %s155, %s158
    %p164 = scmp.eq.s32.totalorder %s14, 0
    %p165 = por %p163, %p164
    %p166 = scmp.ne.s32.totalorder %s155, %s158
    %p167 = scmp.eq.s32.totalorder %s19, 1
    %p168 = por %p166, %p167
    %p169 = scmp.ne.s32.totalorder %s158, %s159
    %p170 = scmp.eq.s32.totalorder %s19, 0
    %p171 = por %p169, %p170
    %p172 = scmp.ne.s32.totalorder %s158, %s159
    %p173 = scmp.eq.s32.totalorder %s20, 1
    %p174 = por %p172, %p173
    %p176 = scmp.ne.s32.totalorder %s159, %s175
    %p177 = scmp.eq.s32.totalorder %s20, 0
    %p178 = por %p176, %p177
    %s179 = ssub.s32 %s14, %s21
    %p180 = scmp.eq.s32.totalorder %s179, 0
    %s182 = sadd.s32 %s181, 1
    %s183 = scalar_select %p180, %s181, %s182
    %p186 = pneg %p180
    %p187 = scmp.eq.s32.totalorder %s14, 1
    %p188 = por %p186, %p187
    %p189 = scmp.ne.s32.totalorder %s181, %s184
    %p190 = scmp.eq.s32.totalorder %s14, 0
    %p191 = por %p189, %p190
    %p192 = scmp.ne.s32.totalorder %s181, %s184
    %p193 = scmp.eq.s32.totalorder %s19, 1
    %p194 = por %p192, %p193
    %p195 = scmp.ne.s32.totalorder %s184, %s185
    %p196 = scmp.eq.s32.totalorder %s19, 0
    %p197 = por %p195, %p196
    %p198 = scmp.ne.s32.totalorder %s184, %s185
    %p199 = scmp.eq.s32.totalorder %s20, 1
    %p200 = por %p198, %p199
    %p202 = scmp.ne.s32.totalorder %s185, %s201
    %p203 = scmp.eq.s32.totalorder %s20, 0
    %p204 = por %p202, %p203
    %p205 = scmp.le.s32.totalorder 1, %s14
    %p206 = scmp.lt.s32.totalorder %s14, 3
    %p207 = pnand %p205, %p206
    %p208 = pneg %p207
    // Predicated region
    $region9: #{encoder_forward.1} parent=5 // pred_check
      _
    $region10: #{encoder_forward.1} parent=5 // pred_check_branch
      %210 = sbr.rel (%p207) target = $region12
    $region11: #{encoder_forward.1} parent=5 // pred_region
      %s211 = ssub.s32 %s14, 1
      // Predicated region
      $region13: #{encoder_forward.1} parent=11 // pred_check
        %p212 = pneg %p61
      $region14: #{encoder_forward.1} parent=11 // pred_check_branch
        %214 = sbr.rel (%p212) target = $region16
      $region15: #{encoder_forward.1} parent=11 // pred_region
        _
      $region16: #{encoder_forward.1} parent=11 // pred_fallthru
        _
      // Predicated region
      $region17: #{encoder_forward.1} parent=11 // pred_check
        %p215 = pneg %p82
      $region18: #{encoder_forward.1} parent=11 // pred_check_branch
        %217 = sbr.rel (%p215) target = $region20
      $region19: #{encoder_forward.1} parent=11 // pred_region
        _
      $region20: #{encoder_forward.1} parent=11 // pred_fallthru
        _
      // Predicated region
      $region21: #{encoder_forward.1} parent=11 // pred_check
        %p218 = pneg %p103
      $region22: #{encoder_forward.1} parent=11 // pred_check_branch
        %220 = sbr.rel (%p218) target = $region24
      $region23: #{encoder_forward.1} parent=11 // pred_region
        _
      $region24: #{encoder_forward.1} parent=11 // pred_fallthru
        _
      // Predicated region
      $region25: #{encoder_forward.1} parent=11 // pred_check
        %p221 = pneg %p124
      $region26: #{encoder_forward.1} parent=11 // pred_check_branch
        %223 = sbr.rel (%p221) target = $region28
      $region27: #{encoder_forward.1} parent=11 // pred_region
        _
      $region28: #{encoder_forward.1} parent=11 // pred_fallthru
        _
      // Predicated region
      $region29: #{encoder_forward.1} parent=11 // pred_check
        %p224 = pneg %p145
      $region30: #{encoder_forward.1} parent=11 // pred_check_branch
        %226 = sbr.rel (%p224) target = $region32
      $region31: #{encoder_forward.1} parent=11 // pred_region
        _
      $region32: #{encoder_forward.1} parent=11 // pred_fallthru
        _
    $region12: #{encoder_forward.1} parent=5 // pred_fallthru
      _
    %p227 = scmp.lt.s32.totalorder %s14, 2
    // Predicated region
    $region33: #{encoder_forward.1} parent=5 // pred_check
      %p228 = pneg %p227
    $region34: #{encoder_forward.1} parent=5 // pred_check_branch
      %230 = sbr.rel (%p228) target = $region36
    $region35: #{encoder_forward.1} parent=5 // pred_region
      // Predicated region
      $region37: #{encoder_forward.1} parent=35 // pred_check
        %p231 = pneg %p34
      $region38: #{encoder_forward.1} parent=35 // pred_check_branch
        %233 = sbr.rel (%p231) target = $region40
      $region39: #{encoder_forward.1} parent=35 // pred_region
        %p234 = scmp.lt.s32.totalorder %s14, 1
        %s235 = scalar_select %p234, %s14, 1
        %s236 = smul.addr %s235, 3
        %s237 = smul.addr %s236, 8
        %s238 = scalar_lea.vmem %s0, %s237
      $region40: #{encoder_forward.1} parent=35 // pred_fallthru
        _
    $region36: #{encoder_forward.1} parent=5 // pred_fallthru
      _
    %p239 = scmp.le.s32.totalorder 1, %s14
    %p240 = scmp.lt.s32.totalorder %s14, 3
    %p241 = pnand %p239, %p240
    %p242 = pneg %p241
    // Predicated region
    $region41: #{encoder_forward.1} parent=5 // pred_check
      _
    $region42: #{encoder_forward.1} parent=5 // pred_check_branch
      %244 = sbr.rel (%p241) target = $region44
    $region43: #{encoder_forward.1} parent=5 // pred_region
      %s245 = ssub.s32 %s14, 1
      %p246 = scmp.lt.s32.totalorder %s19, 1
      %s247 = scalar_select %p246, %s19, 1
      %s248 = smul.addr %s247, 3
      %s249 = smul.addr %s248, 8
      %s250 = scalar_lea.vmem %s0, %s249
      %p251 = pneg %p40
      %p252 = pneg %p37
      %p253 = pneg %p61
      %p254 = pneg %p58
      %p255 = pneg %p82
      %p256 = pneg %p79
      %p257 = pneg %p103
      %p258 = pneg %p100
      %p259 = pneg %p124
      %p260 = pneg %p121
      %p261 = pneg %p145
      %p262 = pneg %p142
      %p263 = pneg %p171
      %p264 = pneg %p168
      %p265 = scmp.lt.s32.totalorder %s19, 1
      %s266 = scalar_select %p265, %s19, 1
      %s267 = smul.addr %s266, 3
      %s268 = smul.addr %s267, 8
      %s269 = scalar_lea.vmem %s6, %s268
      %p270 = pneg %p197
      %p271 = pneg %p194
      %p272 = scmp.lt.s32.totalorder %s19, 1
      %s273 = scalar_select %p272, %s19, 1
      %s274 = smul.addr %s273, 3
      %s275 = smul.addr %s274, 8
      %s276 = scalar_lea.vmem %s7, %s275
      %p277 = scmp.lt.s32.totalorder %s19, 1
      %s278 = scalar_select %p277, %s19, 1
      %s279 = smul.addr %s278, 3
      %s280 = smul.addr %s279, 8
      %s281 = scalar_lea.vmem %s0, %s280
      %p282 = scmp.lt.s32.totalorder %s19, 1
      %s283 = scalar_select %p282, %s19, 1
      %s284 = smul.addr %s283, 3
      %s285 = smul.addr %s284, 8
      %s286 = scalar_lea.vmem %s6, %s285
      %p287 = scmp.lt.s32.totalorder %s19, 1
      %s288 = scalar_select %p287, %s19, 1
      %s289 = smul.addr %s288, 3
      %s290 = smul.addr %s289, 8
      %s291 = scalar_lea.vmem %s7, %s290
      %vm292 = vcmask 195584
      %293 = vst.msk [vmem:[#allocation2] sm:$0xff] %vm292, 0.0
      %vm294 = vcmask 949984
      %295 = vst.msk [vmem:[#allocation2 + $0x10] sm:$0xff] %vm294, 0.0
      %v296 = vld [vmem:[%s5] sm:$0x7]
      %v297 = vld [vmem:[%s1] sm:$0xff]
      %v298 = vld [vmem:[%s2] sm:$0xff]
      %v299 = vld [vmem:[%s3] sm:$0xff]
      %v300 = vld [vmem:[%s4] sm:$0xff]
      %v301 = vld [vmem:[%s281] sm:$0xff]
      %v302 = vld [vmem:[%s281 + $0x8] sm:$0xff]
      %v303 = vld [vmem:[%s281 + $0x10] sm:$0xff]
      %307 = vrot.lane.b32.xlu0 %v301, 127
      %v308 = vpop.permute.xlu0 %307
      %309 = vrot.lane.b32.xlu0 %v302, 127
      %v310 = vpop.permute.xlu0 %309
      %311 = vrot.lane.b32.xlu0 %v303, 127
      %v312 = vpop.permute.xlu0 %311
      %vm313 = vcmask 1039360
      %v314 = vsel %vm313, %v308, %v310
      %v315 = vsel %vm313, %v310, %v312
      %316 = vrot.lane.b32.xlu0 %v301, 126
      %v317 = vpop.permute.xlu0 %316
      %318 = vrot.lane.b32.xlu0 %v302, 126
      %v319 = vpop.permute.xlu0 %318
      %320 = vrot.lane.b32.xlu0 %v303, 126
      %v321 = vpop.permute.xlu0 %320
      %vm322 = vcmask 1031168
      %v323 = vsel %vm322, %v317, %v319
      %v324 = vsel %vm322, %v319, %v321
      %325 = vrot.lane.b32.xlu0 %v301, 110
      %v326 = vpop.permute.xlu0 %325
      %327 = vrot.lane.b32.xlu0 %v302, 110
      %v328 = vpop.permute.xlu0 %327
      %329 = vrot.lane.b32.xlu0 %v303, 110
      %v330 = vpop.permute.xlu0 %329
      %vm331 = vcmask 900096
      %v332 = vsel %vm331, %v326, %v328
      %v333 = vsel %vm331, %v328, %v330
      %334 = vrot.lane.b32.xlu0 %v301, 109
      %v335 = vpop.permute.xlu0 %334
      %336 = vrot.lane.b32.xlu0 %v302, 109
      %v337 = vpop.permute.xlu0 %336
      %338 = vrot.lane.b32.xlu0 %v303, 109
      %v339 = vpop.permute.xlu0 %338
      %vm340 = vcmask 891904
      %v341 = vsel %vm340, %v335, %v337
      %v342 = vsel %vm340, %v337, %v339
      %343 = vrot.lane.b32.xlu0 %v301, 108
      %v344 = vpop.permute.xlu0 %343
      %345 = vrot.lane.b32.xlu0 %v302, 108
      %v346 = vpop.permute.xlu0 %345
      %347 = vrot.lane.b32.xlu0 %v303, 108
      %v348 = vpop.permute.xlu0 %347
      %vm349 = vcmask 883712
      %v350 = vsel %vm349, %v344, %v346
      %v351 = vsel %vm349, %v346, %v348
      %352 = vrot.lane.b32.xlu0 %v301, 92
      %v353 = vpop.permute.xlu0 %352
      %354 = vrot.lane.b32.xlu0 %v302, 92
      %v355 = vpop.permute.xlu0 %354
      %356 = vrot.lane.b32.xlu0 %v303, 92
      %v357 = vpop.permute.xlu0 %356
      %vm358 = vcmask 752640
      %v359 = vsel %vm358, %v353, %v355
      %v360 = vsel %vm358, %v355, %v357
      %361 = vrot.lane.b32.xlu0 %v301, 91
      %v362 = vpop.permute.xlu0 %361
      %363 = vrot.lane.b32.xlu0 %v302, 91
      %v364 = vpop.permute.xlu0 %363
      %365 = vrot.lane.b32.xlu0 %v303, 91
      %v366 = vpop.permute.xlu0 %365
      %vm367 = vcmask 744448
      %v368 = vsel %vm367, %v362, %v364
      %v369 = vsel %vm367, %v364, %v366
      %370 = vrot.lane.b32.xlu0 %v301, 90
      %v371 = vpop.permute.xlu0 %370
      %372 = vrot.lane.b32.xlu0 %v302, 90
      %v373 = vpop.permute.xlu0 %372
      %374 = vrot.lane.b32.xlu0 %v303, 90
      %v375 = vpop.permute.xlu0 %374
      %vm376 = vcmask 736256
      %v377 = vsel %vm376, %v371, %v373
      %v378 = vsel %vm376, %v373, %v375
      %380 = vset.pattern.permute.xlu0 0
      %381 = vperm.xlu0 %380, %v298
      %v382 = vpop.permute.xlu0 %381
      %384 = vrot.lane.b32.xlu0 %v301, 123
      %v385 = vpop.permute.xlu0 %384
      %386 = vrot.lane.b32.xlu0 %v302, 123
      %v387 = vpop.permute.xlu0 %386
      %388 = vrot.lane.b32.xlu0 %v303, 123
      %v389 = vpop.permute.xlu0 %388
      %390 = vrot.lane.b32.xlu0 %v314, 123
      %v391 = vpop.permute.xlu0 %390
      %392 = vrot.lane.b32.xlu0 %v315, 123
      %v393 = vpop.permute.xlu0 %392
      %394 = vrot.lane.b32.xlu0 %v312, 123
      %v395 = vpop.permute.xlu0 %394
      %396 = vrot.lane.b32.xlu0 %v323, 123
      %v397 = vpop.permute.xlu0 %396
      %398 = vrot.lane.b32.xlu0 %v324, 123
      %v399 = vpop.permute.xlu0 %398
      %400 = vrot.lane.b32.xlu0 %v321, 123
      %v401 = vpop.permute.xlu0 %400
      %402 = vrot.lane.b32.xlu0 %v332, 123
      %v403 = vpop.permute.xlu0 %402
      %404 = vrot.lane.b32.xlu0 %v333, 123
      %v405 = vpop.permute.xlu0 %404
      %406 = vrot.lane.b32.xlu0 %v330, 123
      %v407 = vpop.permute.xlu0 %406
      %408 = vrot.lane.b32.xlu0 %v341, 123
      %v409 = vpop.permute.xlu0 %408
      %410 = vrot.lane.b32.xlu0 %v342, 123
      %v411 = vpop.permute.xlu0 %410
      %412 = vrot.lane.b32.xlu0 %v339, 123
      %v413 = vpop.permute.xlu0 %412
      %414 = vrot.lane.b32.xlu0 %v350, 123
      %v415 = vpop.permute.xlu0 %414
      %416 = vrot.lane.b32.xlu0 %v351, 123
      %v417 = vpop.permute.xlu0 %416
      %418 = vrot.lane.b32.xlu0 %v348, 123
      %v419 = vpop.permute.xlu0 %418
      %420 = vrot.lane.b32.xlu0 %v359, 123
      %v421 = vpop.permute.xlu0 %420
      %422 = vrot.lane.b32.xlu0 %v360, 123
      %v423 = vpop.permute.xlu0 %422
      %424 = vrot.lane.b32.xlu0 %v357, 123
      %v425 = vpop.permute.xlu0 %424
      %426 = vrot.lane.b32.xlu0 %v368, 123
      %v427 = vpop.permute.xlu0 %426
      %428 = vrot.lane.b32.xlu0 %v369, 123
      %v429 = vpop.permute.xlu0 %428
      %430 = vrot.lane.b32.xlu0 %v366, 123
      %v431 = vpop.permute.xlu0 %430
      %432 = vrot.lane.b32.xlu0 %v377, 123
      %v433 = vpop.permute.xlu0 %432
      %434 = vrot.lane.b32.xlu0 %v378, 123
      %v435 = vpop.permute.xlu0 %434
      %436 = vrot.lane.b32.xlu0 %v375, 123
      %v437 = vpop.permute.xlu0 %436
      %vm438 = vcmask 1006592
      %v439 = vsel %vm438, %v385, %v387
      %v440 = vsel %vm438, %v387, %v389
      %v441 = vsel %vm438, %v391, %v393
      %v442 = vsel %vm438, %v393, %v395
      %v443 = vsel %vm438, %v397, %v399
      %v444 = vsel %vm438, %v399, %v401
      %v445 = vsel %vm438, %v403, %v405
      %v446 = vsel %vm438, %v405, %v407
      %v447 = vsel %vm438, %v409, %v411
      %v448 = vsel %vm438, %v411, %v413
      %v449 = vsel %vm438, %v415, %v417
      %v450 = vsel %vm438, %v417, %v419
      %v451 = vsel %vm438, %v421, %v423
      %v452 = vsel %vm438, %v423, %v425
      %v453 = vsel %vm438, %v427, %v429
      %v454 = vsel %vm438, %v429, %v431
      %v455 = vsel %vm438, %v433, %v435
      %v456 = vsel %vm438, %v435, %v437
      %vm484 = vcmask 588800
      %v486 = vsel %vm484, %v297, 0
      %488 = vmatprep.subr.mxu0 %v440
      %489 = vmatpush1.msra.mxu0 %v439
      %490 = vmatprep.subr.mxu0 %v442
      %491 = vmatpush1.msra.mxu0 %v441
      %492 = vmatprep.subr.mxu0 %v444
      %493 = vmatpush1.msra.mxu0 %v443
      %494 = vmatprep.subr.mxu0 %v446
      %495 = vmatpush1.msra.mxu0 %v445
      %496 = vmatprep.subr.mxu0 %v448
      %497 = vmatpush1.msra.mxu0 %v447
      %498 = vmatprep.subr.mxu0 %v450
      %499 = vmatpush1.msra.mxu0 %v449
      %500 = vmatprep.subr.mxu0 %v452
      %501 = vmatpush1.msra.mxu0 %v451
      %502 = vmatprep.subr.mxu0 %v454
      %503 = vmatpush1.msra.mxu0 %v453
      %504 = vmatprep.subr.mxu0 %v456
      %505 = vmatpush1.msra.mxu0 %v455
      %506 = vmatprep.subr.mxu0 0.0
      %507 = vmatpush1.msra.mxu0 0.0
      %508 = vmatprep.subr.mxu0 0.0
      %509 = vmatpush1.msra.mxu0 0.0
      %510 = vmatprep.subr.mxu0 0.0
      %511 = vmatpush1.msra.mxu0 0.0
      %512 = vmatprep.subr.mxu0 0.0
      %513 = vmatpush1.msra.mxu0 0.0
      %514 = vmatprep.subr.mxu0 0.0
      %515 = vmatpush1.msra.mxu0 0.0
      %516 = vmatprep.subr.mxu0 0.0
      %517 = vmatpush1.msra.mxu0 0.0
      %518 = vmatprep.subr.mxu0 0.0
      %519 = vmatpush1.msra.mxu0 0.0
      %520 = vmatprep.subr.mxu0 0.0
      %521 = vmatpush1.msra.mxu0 0.0
      %522 = vmatprep.subr.mxu0 0.0
      %523 = vmatpush1.msra.mxu0 0.0
      %524 = vmatprep.subr.mxu0 0.0
      %525 = vmatpush1.msra.mxu0 0.0
      %526 = vmatprep.subr.mxu0 0.0
      %527 = vmatpush1.msra.mxu0 0.0
      %528 = vmatprep.subr.mxu0 0.0
      %529 = vmatpush1.msra.mxu0 0.0
      %530 = vmatprep.subr.mxu0 0.0
      %531 = vmatpush1.msra.mxu0 0.0
      %532 = vmatprep.subr.mxu0 0.0
      %533 = vmatpush1.msra.mxu0 0.0
      %534 = vmatprep.subr.mxu0 0.0
      %535 = vmatpush1.msra.mxu0 0.0
      %536 = vmatprep.subr.mxu0 0.0
      %537 = vmatpush1.msra.mxu0 0.0
      %538 = vmatprep.subr.mxu0 0.0
      %539 = vmatpush1.msra.mxu0 0.0
      %540 = vmatprep.subr.mxu0 0.0
      %541 = vmatpush1.msra.mxu0 0.0
      %542 = vmatprep.subr.mxu0 0.0
      %543 = vmatpush1.msra.mxu0 0.0
      %544 = vmatprep.subr.mxu0 0.0
      %545 = vmatpush1.msra.mxu0 0.0
      %546 = vmatprep.subr.mxu0 0.0
      %547 = vmatpush1.msra.mxu0 0.0
      %548 = vmatprep.subr.mxu0 0.0
      %549 = vmatpush1.msra.mxu0 0.0
      %550 = vmatprep.subr.mxu0 0.0
      %551 = vmatpush1.msra.mxu0 0.0
      %552 = vmatprep.mubr.f32.mxu0 0.0
      %553 = vmatmul.mubr.f32.gmra.mrb[0].mxu0 %v486
      %v554 = vpop.f32.mrb[0].mxu0
      %v555 = vadd.f32 %v382, %v554
      %v556 = vpop.f32.mrb[0].mxu0
      %v557 = vadd.f32 %v382, %v556
      %558 = vdwg.mxu0
      %559 = vmatprep.subr.mxu0 0.0
      %560 = vmatpush1.msra.mxu0 %v389
      %561 = vmatprep.subr.mxu0 0.0
      %562 = vmatpush1.msra.mxu0 %v395
      %563 = vmatprep.subr.mxu0 0.0
      %564 = vmatpush1.msra.mxu0 %v401
      %565 = vmatprep.subr.mxu0 0.0
      %566 = vmatpush1.msra.mxu0 %v407
      %567 = vmatprep.subr.mxu0 0.0
      %568 = vmatpush1.msra.mxu0 %v413
      %569 = vmatprep.subr.mxu0 0.0
      %570 = vmatpush1.msra.mxu0 %v419
      %571 = vmatprep.subr.mxu0 0.0
      %572 = vmatpush1.msra.mxu0 %v425
      %573 = vmatprep.subr.mxu0 0.0
      %574 = vmatpush1.msra.mxu0 %v431
      %575 = vmatprep.subr.mxu0 0.0
      %576 = vmatpush1.msra.mxu0 %v437
      %577 = vmatprep.subr.mxu0 0.0
      %578 = vmatpush1.msra.mxu0 0.0
      %579 = vmatprep.subr.mxu0 0.0
      %580 = vmatpush1.msra.mxu0 0.0
      %581 = vmatprep.subr.mxu0 0.0
      %582 = vmatpush1.msra.mxu0 0.0
      %583 = vmatprep.subr.mxu0 0.0
      %584 = vmatpush1.msra.mxu0 0.0
      %585 = vmatprep.subr.mxu0 0.0
      %586 = vmatpush1.msra.mxu0 0.0
      %587 = vmatprep.subr.mxu0 0.0
      %588 = vmatpush1.msra.mxu0 0.0
      %589 = vmatprep.subr.mxu0 0.0
      %590 = vmatpush1.msra.mxu0 0.0
      %591 = vmatprep.subr.mxu0 0.0
      %592 = vmatpush1.msra.mxu0 0.0
      %593 = vmatprep.subr.mxu0 0.0
      %594 = vmatpush1.msra.mxu0 0.0
      %595 = vmatprep.subr.mxu0 0.0
      %596 = vmatpush1.msra.mxu0 0.0
      %597 = vmatprep.subr.mxu0 0.0
      %598 = vmatpush1.msra.mxu0 0.0
      %599 = vmatprep.subr.mxu0 0.0
      %600 = vmatpush1.msra.mxu0 0.0
      %601 = vmatprep.subr.mxu0 0.0
      %602 = vmatpush1.msra.mxu0 0.0
      %603 = vmatprep.subr.mxu0 0.0
      %604 = vmatpush1.msra.mxu0 0.0
      %605 = vmatprep.subr.mxu0 0.0
      %606 = vmatpush1.msra.mxu0 0.0
      %607 = vmatprep.subr.mxu0 0.0
      %608 = vmatpush1.msra.mxu0 0.0
      %609 = vmatprep.subr.mxu0 0.0
      %610 = vmatpush1.msra.mxu0 0.0
      %611 = vmatprep.subr.mxu0 0.0
      %612 = vmatpush1.msra.mxu0 0.0
      %613 = vmatprep.subr.mxu0 0.0
      %614 = vmatpush1.msra.mxu0 0.0
      %615 = vmatprep.subr.mxu0 0.0
      %616 = vmatpush1.msra.mxu0 0.0
      %617 = vmatprep.subr.mxu0 0.0
      %618 = vmatpush1.msra.mxu0 0.0
      %619 = vmatprep.subr.mxu0 0.0
      %620 = vmatpush1.msra.mxu0 0.0
      %621 = vmatprep.subr.mxu0 0.0
      %622 = vmatpush1.msra.mxu0 0.0
      %623 = vmatprep.mubr.f32.mxu0 0.0
      %624 = vmatmul.mubr.f32.gmra.mrb[0].mxu0 %v486
      %v625 = vpop.f32.mrb[0].mxu0
      %v626 = vadd.f32 %v382, %v625
      %v627 = vpop.f32.mrb[0].mxu0
      %628 = vdwg.mxu0
      %v629 = vmax.f32 %v555, 0.0
      %v630 = vmax.f32 %v557, 0.0
      %v631 = vmax.f32 %v626, 0.0
      %v633 = vlaneseq
      %v634 = vshrl.u32 %v633, 7
      %v635 = vsub.s32 0, %v634
      %v636 = vrot.slane %v296, %v635
      %v637 = vlaneseq
      %v638 = vshrl.u32 %v637, 7
      %v639 = vsub.s32 1, %v638
      %v640 = vrot.slane %v296, %v639
      %v641 = vlaneseq
      %v642 = vshrl.u32 %v641, 7
      %v643 = vsub.s32 2, %v642
      %v644 = vrot.slane %v296, %v643
      %v648 = vmul.f32 %v629, %v636
      %v649 = vmul.f32 %v630, %v640
      %v650 = vmul.f32 %v631, %v644
      %654 = vrot.lane.b32.xlu0 %v648, 24
      %v655 = vpop.permute.xlu0 %654
      %656 = vrot.lane.b32.xlu0 %v649, 24
      %v657 = vpop.permute.xlu0 %656
      %658 = vrot.lane.b32.xlu0 %v650, 24
      %v659 = vpop.permute.xlu0 %658
      %v660 = vsel %vm292, %v655, %v657
      %v661 = vsel %vm292, %v657, %v659
      %vm665 = vcmask 1047744
      %666 = vst.msk [vmem:[#allocation2] sm:$0xff] %vm665, %v655
      %667 = vst [vmem:[#allocation2 + $0x8] sm:$0xff] %v660
      %668 = vst.msk [vmem:[#allocation2 + $0x10] sm:$0xff] %vm358, %v661
      %v669 = vld [vmem:[#allocation2] sm:$0xff]
      %v670 = vld [vmem:[#allocation2 + $0x8] sm:$0xff]
      %v671 = vld [vmem:[#allocation2 + $0x10] sm:$0xff]
      %675 = vrot.lane.b32.xlu0 %v669, 127
      %v676 = vpop.permute.xlu0 %675
      %677 = vrot.lane.b32.xlu0 %v670, 127
      %v678 = vpop.permute.xlu0 %677
      %679 = vrot.lane.b32.xlu0 %v671, 127
      %v680 = vpop.permute.xlu0 %679
      %v681 = vsel %vm313, %v676, %v678
      %v682 = vsel %vm313, %v678, %v680
      %683 = vrot.lane.b32.xlu0 %v669, 126
      %v684 = vpop.permute.xlu0 %683
      %685 = vrot.lane.b32.xlu0 %v670, 126
      %v686 = vpop.permute.xlu0 %685
      %687 = vrot.lane.b32.xlu0 %v671, 126
      %v688 = vpop.permute.xlu0 %687
      %v689 = vsel %vm322, %v684, %v686
      %v690 = vsel %vm322, %v686, %v688
      %691 = vrot.lane.b32.xlu0 %v669, 110
      %v692 = vpop.permute.xlu0 %691
      %693 = vrot.lane.b32.xlu0 %v670, 110
      %v694 = vpop.permute.xlu0 %693
      %695 = vrot.lane.b32.xlu0 %v671, 110
      %v696 = vpop.permute.xlu0 %695
      %v697 = vsel %vm331, %v692, %v694
      %v698 = vsel %vm331, %v694, %v696
      %699 = vrot.lane.b32.xlu0 %v669, 109
      %v700 = vpop.permute.xlu0 %699
      %701 = vrot.lane.b32.xlu0 %v670, 109
      %v702 = vpop.permute.xlu0 %701
      %703 = vrot.lane.b32.xlu0 %v671, 109
      %v704 = vpop.permute.xlu0 %703
      %v705 = vsel %vm340, %v700, %v702
      %v706 = vsel %vm340, %v702, %v704
      %707 = vrot.lane.b32.xlu0 %v669, 108
      %v708 = vpop.permute.xlu0 %707
      %709 = vrot.lane.b32.xlu0 %v670, 108
      %v710 = vpop.permute.xlu0 %709
      %711 = vrot.lane.b32.xlu0 %v671, 108
      %v712 = vpop.permute.xlu0 %711
      %v713 = vsel %vm349, %v708, %v710
      %v714 = vsel %vm349, %v710, %v712
      %715 = vrot.lane.b32.xlu0 %v669, 92
      %v716 = vpop.permute.xlu0 %715
      %717 = vrot.lane.b32.xlu0 %v670, 92
      %v718 = vpop.permute.xlu0 %717
      %719 = vrot.lane.b32.xlu0 %v671, 92
      %v720 = vpop.permute.xlu0 %719
      %v721 = vsel %vm358, %v716, %v718
      %v722 = vsel %vm358, %v718, %v720
      %723 = vrot.lane.b32.xlu0 %v669, 91
      %v724 = vpop.permute.xlu0 %723
      %725 = vrot.lane.b32.xlu0 %v670, 91
      %v726 = vpop.permute.xlu0 %725
      %727 = vrot.lane.b32.xlu0 %v671, 91
      %v728 = vpop.permute.xlu0 %727
      %v729 = vsel %vm367, %v724, %v726
      %v730 = vsel %vm367, %v726, %v728
      %731 = vrot.lane.b32.xlu0 %v669, 90
      %v732 = vpop.permute.xlu0 %731
      %733 = vrot.lane.b32.xlu0 %v670, 90
      %v734 = vpop.permute.xlu0 %733
      %735 = vrot.lane.b32.xlu0 %v671, 90
      %v736 = vpop.permute.xlu0 %735
      %v737 = vsel %vm376, %v732, %v734
      %v738 = vsel %vm376, %v734, %v736
      %740 = vset.pattern.permute.xlu0 0
      %741 = vperm.xlu0 %740, %v300
      %v742 = vpop.permute.xlu0 %741
      %744 = vrot.lane.b32.xlu0 %v669, 123
      %v745 = vpop.permute.xlu0 %744
      %746 = vrot.lane.b32.xlu0 %v670, 123
      %v747 = vpop.permute.xlu0 %746
      %748 = vrot.lane.b32.xlu0 %v671, 123
      %v749 = vpop.permute.xlu0 %748
      %750 = vrot.lane.b32.xlu0 %v681, 123
      %v751 = vpop.permute.xlu0 %750
      %752 = vrot.lane.b32.xlu0 %v682, 123
      %v753 = vpop.permute.xlu0 %752
      %754 = vrot.lane.b32.xlu0 %v680, 123
      %v755 = vpop.permute.xlu0 %754
      %756 = vrot.lane.b32.xlu0 %v689, 123
      %v757 = vpop.permute.xlu0 %756
      %758 = vrot.lane.b32.xlu0 %v690, 123
      %v759 = vpop.permute.xlu0 %758
      %760 = vrot.lane.b32.xlu0 %v688, 123
      %v761 = vpop.permute.xlu0 %760
      %762 = vrot.lane.b32.xlu0 %v697, 123
      %v763 = vpop.permute.xlu0 %762
      %764 = vrot.lane.b32.xlu0 %v698, 123
      %v765 = vpop.permute.xlu0 %764
      %766 = vrot.lane.b32.xlu0 %v696, 123
      %v767 = vpop.permute.xlu0 %766
      %768 = vrot.lane.b32.xlu0 %v705, 123
      %v769 = vpop.permute.xlu0 %768
      %770 = vrot.lane.b32.xlu0 %v706, 123
      %v771 = vpop.permute.xlu0 %770
      %772 = vrot.lane.b32.xlu0 %v704, 123
      %v773 = vpop.permute.xlu0 %772
      %774 = vrot.lane.b32.xlu0 %v713, 123
      %v775 = vpop.permute.xlu0 %774
      %776 = vrot.lane.b32.xlu0 %v714, 123
      %v777 = vpop.permute.xlu0 %776
      %778 = vrot.lane.b32.xlu0 %v712, 123
      %v779 = vpop.permute.xlu0 %778
      %780 = vrot.lane.b32.xlu0 %v721, 123
      %v781 = vpop.permute.xlu0 %780
      %782 = vrot.lane.b32.xlu0 %v722, 123
      %v783 = vpop.permute.xlu0 %782
      %784 = vrot.lane.b32.xlu0 %v720, 123
      %v785 = vpop.permute.xlu0 %784
      %786 = vrot.lane.b32.xlu0 %v729, 123
      %v787 = vpop.permute.xlu0 %786
      %788 = vrot.lane.b32.xlu0 %v730, 123
      %v789 = vpop.permute.xlu0 %788
      %790 = vrot.lane.b32.xlu0 %v728, 123
      %v791 = vpop.permute.xlu0 %790
      %792 = vrot.lane.b32.xlu0 %v737, 123
      %v793 = vpop.permute.xlu0 %792
      %794 = vrot.lane.b32.xlu0 %v738, 123
      %v795 = vpop.permute.xlu0 %794
      %796 = vrot.lane.b32.xlu0 %v736, 123
      %v797 = vpop.permute.xlu0 %796
      %v798 = vsel %vm438, %v745, %v747
      %v799 = vsel %vm438, %v747, %v749
      %v800 = vsel %vm438, %v751, %v753
      %v801 = vsel %vm438, %v753, %v755
      %v802 = vsel %vm438, %v757, %v759
      %v803 = vsel %vm438, %v759, %v761
      %v804 = vsel %vm438, %v763, %v765
      %v805 = vsel %vm438, %v765, %v767
      %v806 = vsel %vm438, %v769, %v771
      %v807 = vsel %vm438, %v771, %v773
      %v808 = vsel %vm438, %v775, %v777
      %v809 = vsel %vm438, %v777, %v779
      %v810 = vsel %vm438, %v781, %v783
      %v811 = vsel %vm438, %v783, %v785
      %v812 = vsel %vm438, %v787, %v789
      %v813 = vsel %vm438, %v789, %v791
      %v814 = vsel %vm438, %v793, %v795
      %v815 = vsel %vm438, %v795, %v797
      %v844 = vsel %vm484, %v299, 0
      %846 = vmatprep.subr.mxu0 %v799
      %847 = vmatpush1.msra.mxu0 %v798
      %848 = vmatprep.subr.mxu0 %v801
      %849 = vmatpush1.msra.mxu0 %v800
      %850 = vmatprep.subr.mxu0 %v803
      %851 = vmatpush1.msra.mxu0 %v802
      %852 = vmatprep.subr.mxu0 %v805
      %853 = vmatpush1.msra.mxu0 %v804
      %854 = vmatprep.subr.mxu0 %v807
      %855 = vmatpush1.msra.mxu0 %v806
      %856 = vmatprep.subr.mxu0 %v809
      %857 = vmatpush1.msra.mxu0 %v808
      %858 = vmatprep.subr.mxu0 %v811
      %859 = vmatpush1.msra.mxu0 %v810
      %860 = vmatprep.subr.mxu0 %v813
      %861 = vmatpush1.msra.mxu0 %v812
      %862 = vmatprep.subr.mxu0 %v815
      %863 = vmatpush1.msra.mxu0 %v814
      %864 = vmatprep.subr.mxu0 0.0
      %865 = vmatpush1.msra.mxu0 0.0
      %866 = vmatprep.subr.mxu0 0.0
      %867 = vmatpush1.msra.mxu0 0.0
      %868 = vmatprep.subr.mxu0 0.0
      %869 = vmatpush1.msra.mxu0 0.0
      %870 = vmatprep.subr.mxu0 0.0
      %871 = vmatpush1.msra.mxu0 0.0
      %872 = vmatprep.subr.mxu0 0.0
      %873 = vmatpush1.msra.mxu0 0.0
      %874 = vmatprep.subr.mxu0 0.0
      %875 = vmatpush1.msra.mxu0 0.0
      %876 = vmatprep.subr.mxu0 0.0
      %877 = vmatpush1.msra.mxu0 0.0
      %878 = vmatprep.subr.mxu0 0.0
      %879 = vmatpush1.msra.mxu0 0.0
      %880 = vmatprep.subr.mxu0 0.0
      %881 = vmatpush1.msra.mxu0 0.0
      %882 = vmatprep.subr.mxu0 0.0
      %883 = vmatpush1.msra.mxu0 0.0
      %884 = vmatprep.subr.mxu0 0.0
      %885 = vmatpush1.msra.mxu0 0.0
      %886 = vmatprep.subr.mxu0 0.0
      %887 = vmatpush1.msra.mxu0 0.0
      %888 = vmatprep.subr.mxu0 0.0
      %889 = vmatpush1.msra.mxu0 0.0
      %890 = vmatprep.subr.mxu0 0.0
      %891 = vmatpush1.msra.mxu0 0.0
      %892 = vmatprep.subr.mxu0 0.0
      %893 = vmatpush1.msra.mxu0 0.0
      %894 = vmatprep.subr.mxu0 0.0
      %895 = vmatpush1.msra.mxu0 0.0
      %896 = vmatprep.subr.mxu0 0.0
      %897 = vmatpush1.msra.mxu0 0.0
      %898 = vmatprep.subr.mxu0 0.0
      %899 = vmatpush1.msra.mxu0 0.0
      %900 = vmatprep.subr.mxu0 0.0
      %901 = vmatpush1.msra.mxu0 0.0
      %902 = vmatprep.subr.mxu0 0.0
      %903 = vmatpush1.msra.mxu0 0.0
      %904 = vmatprep.subr.mxu0 0.0
      %905 = vmatpush1.msra.mxu0 0.0
      %906 = vmatprep.subr.mxu0 0.0
      %907 = vmatpush1.msra.mxu0 0.0
      %908 = vmatprep.subr.mxu0 0.0
      %909 = vmatpush1.msra.mxu0 0.0
      %910 = vmatprep.mubr.f32.mxu0 0.0
      %911 = vmatmul.mubr.f32.gmra.mrb[0].mxu0 %v844
      %v912 = vpop.f32.mrb[0].mxu0
      %v913 = vadd.f32 %v742, %v912
      %v914 = vpop.f32.mrb[0].mxu0
      %v915 = vadd.f32 %v742, %v914
      %916 = vdwg.mxu0
      %917 = vmatprep.subr.mxu0 0.0
      %918 = vmatpush1.msra.mxu0 %v749
      %919 = vmatprep.subr.mxu0 0.0
      %920 = vmatpush1.msra.mxu0 %v755
      %921 = vmatprep.subr.mxu0 0.0
      %922 = vmatpush1.msra.mxu0 %v761
      %923 = vmatprep.subr.mxu0 0.0
      %924 = vmatpush1.msra.mxu0 %v767
      %925 = vmatprep.subr.mxu0 0.0
      %926 = vmatpush1.msra.mxu0 %v773
      %927 = vmatprep.subr.mxu0 0.0
      %928 = vmatpush1.msra.mxu0 %v779
      %929 = vmatprep.subr.mxu0 0.0
      %930 = vmatpush1.msra.mxu0 %v785
      %931 = vmatprep.subr.mxu0 0.0
      %932 = vmatpush1.msra.mxu0 %v791
      %933 = vmatprep.subr.mxu0 0.0
      %934 = vmatpush1.msra.mxu0 %v797
      %935 = vmatprep.subr.mxu0 0.0
      %936 = vmatpush1.msra.mxu0 0.0
      %937 = vmatprep.subr.mxu0 0.0
      %938 = vmatpush1.msra.mxu0 0.0
      %939 = vmatprep.subr.mxu0 0.0
      %940 = vmatpush1.msra.mxu0 0.0
      %941 = vmatprep.subr.mxu0 0.0
      %942 = vmatpush1.msra.mxu0 0.0
      %943 = vmatprep.subr.mxu0 0.0
      %944 = vmatpush1.msra.mxu0 0.0
      %945 = vmatprep.subr.mxu0 0.0
      %946 = vmatpush1.msra.mxu0 0.0
      %947 = vmatprep.subr.mxu0 0.0
      %948 = vmatpush1.msra.mxu0 0.0
      %949 = vmatprep.subr.mxu0 0.0
      %950 = vmatpush1.msra.mxu0 0.0
      %951 = vmatprep.subr.mxu0 0.0
      %952 = vmatpush1.msra.mxu0 0.0
      %953 = vmatprep.subr.mxu0 0.0
      %954 = vmatpush1.msra.mxu0 0.0
      %955 = vmatprep.subr.mxu0 0.0
      %956 = vmatpush1.msra.mxu0 0.0
      %957 = vmatprep.subr.mxu0 0.0
      %958 = vmatpush1.msra.mxu0 0.0
      %959 = vmatprep.subr.mxu0 0.0
      %960 = vmatpush1.msra.mxu0 0.0
      %961 = vmatprep.subr.mxu0 0.0
      %962 = vmatpush1.msra.mxu0 0.0
      %963 = vmatprep.subr.mxu0 0.0
      %964 = vmatpush1.msra.mxu0 0.0
      %965 = vmatprep.subr.mxu0 0.0
      %966 = vmatpush1.msra.mxu0 0.0
      %967 = vmatprep.subr.mxu0 0.0
      %968 = vmatpush1.msra.mxu0 0.0
      %969 = vmatprep.subr.mxu0 0.0
      %970 = vmatpush1.msra.mxu0 0.0
      %971 = vmatprep.subr.mxu0 0.0
      %972 = vmatpush1.msra.mxu0 0.0
      %973 = vmatprep.subr.mxu0 0.0
      %974 = vmatpush1.msra.mxu0 0.0
      %975 = vmatprep.subr.mxu0 0.0
      %976 = vmatpush1.msra.mxu0 0.0
      %977 = vmatprep.subr.mxu0 0.0
      %978 = vmatpush1.msra.mxu0 0.0
      %979 = vmatprep.subr.mxu0 0.0
      %980 = vmatpush1.msra.mxu0 0.0
      %981 = vmatprep.mubr.f32.mxu0 0.0
      %982 = vmatmul.mubr.f32.gmra.mrb[0].mxu0 %v844
      %v983 = vpop.f32.mrb[0].mxu0
      %v984 = vadd.f32 %v742, %v983
      %v985 = vpop.f32.mrb[0].mxu0
      %986 = vdwg.mxu0
      %v987 = vmax.f32 %v913, 0.0
      %v988 = vmax.f32 %v915, 0.0
      %v989 = vmax.f32 %v984, 0.0
      %990 = vst [vmem:[%s286] sm:$0xff] %v987
      %991 = vst [vmem:[%s286 + $0x8] sm:$0xff] %v988
      %vm992 = vcmask 556032
      %993 = vst.msk [vmem:[%s286 + $0x10] sm:$0xff] %vm992, %v989
      %997 = vrot.lane.b32.xlu0 %v987, 24
      %v998 = vpop.permute.xlu0 %997
      %999 = vrot.lane.b32.xlu0 %v988, 24
      %v1000 = vpop.permute.xlu0 %999
      %1001 = vrot.lane.b32.xlu0 %v989, 24
      %v1002 = vpop.permute.xlu0 %1001
      %v1003 = vsel %vm292, %v998, %v1000
      %v1004 = vsel %vm292, %v1000, %v1002
      %1008 = vst.msk [vmem:[#allocation2] sm:$0xff] %vm665, %v998
      %1009 = vst [vmem:[#allocation2 + $0x8] sm:$0xff] %v1003
      %1010 = vst.msk [vmem:[#allocation2 + $0x10] sm:$0xff] %vm358, %v1004
      %v1011 = vld [vmem:[#allocation2] sm:$0xff]
      %v1012 = vld [vmem:[#allocation2 + $0x8] sm:$0xff]
      %v1013 = vld [vmem:[#allocation2 + $0x10] sm:$0xff]
      %1017 = vrot.lane.b32.xlu0 %v1011, 127
      %v1018 = vpop.permute.xlu0 %1017
      %1019 = vrot.lane.b32.xlu0 %v1012, 127
      %v1020 = vpop.permute.xlu0 %1019
      %1021 = vrot.lane.b32.xlu0 %v1013, 127
      %v1022 = vpop.permute.xlu0 %1021
      %v1023 = vsel %vm313, %v1018, %v1020
      %v1024 = vsel %vm313, %v1020, %v1022
      %v1028 = vmax.f32 %v1011, %v1023
      %v1029 = vmax.f32 %v1012, %v1024
      %v1030 = vmax.f32 %v1013, %v1022
      %1034 = vrot.lane.b32.xlu0 %v1028, 110
      %v1035 = vpop.permute.xlu0 %1034
      %1036 = vrot.lane.b32.xlu0 %v1029, 110
      %v1037 = vpop.permute.xlu0 %1036
      %1038 = vrot.lane.b32.xlu0 %v1030, 110
      %v1039 = vpop.permute.xlu0 %1038
      %v1040 = vsel %vm331, %v1035, %v1037
      %v1041 = vsel %vm331, %v1037, %v1039
      %v1045 = vmax.f32 %v1028, %v1040
      %v1046 = vmax.f32 %v1029, %v1041
      %v1047 = vmax.f32 %v1030, %v1039
      %1051 = vrot.lane.b32.xlu0 %v1045, 104
      %v1052 = vpop.permute.xlu0 %1051
      %1053 = vrot.lane.b32.xlu0 %v1046, 104
      %v1054 = vpop.permute.xlu0 %1053
      %1055 = vrot.lane.b32.xlu0 %v1047, 104
      %v1056 = vpop.permute.xlu0 %1055
      %vm1057 = vcmask 850944
      %v1058 = vsel %vm1057, %v1052, %v1054
      %v1059 = vsel %vm1057, %v1054, %v1056
      %1063 = vst [vmem:[%s291] sm:$0xff] %v1058
      %1064 = vst [vmem:[%s291 + $0x8] sm:$0xff] %v1059
      %1065 = vst.msk [vmem:[%s291 + $0x10] sm:$0xff] %vm992, %v1056
      %p1066 = scmp.lt.s32.totalorder %s19, 1
      %s1067 = scalar_select %p1066, %s19, 1
      %s1068 = smul.addr %s1067, 3
      %s1069 = smul.addr %s1068, 8
      %s1070 = scalar_lea.vmem %s6, %s1069
      %p1071 = scmp.lt.s32.totalorder %s19, 1
      %s1072 = scalar_select %p1071, %s19, 1
      %s1073 = smul.addr %s1072, 3
      %s1074 = smul.addr %s1073, 8
      %s1075 = scalar_lea.vmem %s7, %s1074
      // Predicated region
      $region45: #{encoder_forward.1} parent=43 // pred_check
        %p1076 = pneg %p168
      $region46: #{encoder_forward.1} parent=43 // pred_check_branch
        %1078 = sbr.rel (%p1076) target = $region48
      $region47: #{encoder_forward.1} parent=43 // pred_region
        _
      $region48: #{encoder_forward.1} parent=43 // pred_fallthru
        _
      // Predicated region
      $region49: #{encoder_forward.1} parent=43 // pred_check
        %p1079 = pneg %p194
      $region50: #{encoder_forward.1} parent=43 // pred_check_branch
        %1081 = sbr.rel (%p1079) target = $region52
      $region51: #{encoder_forward.1} parent=43 // pred_region
        _
      $region52: #{encoder_forward.1} parent=43 // pred_fallthru
        _
    $region44: #{encoder_forward.1} parent=5 // pred_fallthru
      _
    %p1082 = scmp.le.s32.totalorder 2, %s14
    // Predicated region
    $region53: #{encoder_forward.1} parent=5 // pred_check
      %p1083 = pneg %p1082
    $region54: #{encoder_forward.1} parent=5 // pred_check_branch
      %1085 = sbr.rel (%p1083) target = $region56
    $region55: #{encoder_forward.1} parent=5 // pred_region
      %s1086 = ssub.s32 %s14, 2
      // Predicated region
      $region57: #{encoder_forward.1} parent=55 // pred_check
        %p1087 = pneg %p174
      $region58: #{encoder_forward.1} parent=55 // pred_check_branch
        %1089 = sbr.rel (%p1087) target = $region60
      $region59: #{encoder_forward.1} parent=55 // pred_region
        %p1090 = scmp.lt.s32.totalorder %s20, 1
        %s1091 = scalar_select %p1090, %s20, 1
        %s1092 = smul.addr %s1091, 3
        %s1093 = smul.addr %s1092, 8
        %s1094 = scalar_lea.vmem %s6, %s1093
      $region60: #{encoder_forward.1} parent=55 // pred_fallthru
        _
      // Predicated region
      $region61: #{encoder_forward.1} parent=55 // pred_check
        %p1095 = pneg %p200
      $region62: #{encoder_forward.1} parent=55 // pred_check_branch
        %1097 = sbr.rel (%p1095) target = $region64
      $region63: #{encoder_forward.1} parent=55 // pred_region
        %p1098 = scmp.lt.s32.totalorder %s20, 1
        %s1099 = scalar_select %p1098, %s20, 1
        %s1100 = smul.addr %s1099, 3
        %s1101 = smul.addr %s1100, 8
        %s1102 = scalar_lea.vmem %s7, %s1101
      $region64: #{encoder_forward.1} parent=55 // pred_fallthru
        _
    $region56: #{encoder_forward.1} parent=5 // pred_fallthru
      _
  $region6: #{encoder_forward.1} parent=0 // loop_footer
    %s18 = sadd.s32 1, %s14
  $region7: #{encoder_forward.1} parent=0 // loop_footer_branch
    %13 = sbr.rel target = $region3
  $region8: #{encoder_forward.1} parent=0 // loop_exit
    _

</llo_original>
